<compile_context>
chip_gen: v6e
topology: v6e:2x2x1
jax: 0.10.0
libtpu: 0.0.40
codegen_flags: <defaults>
</compile_context>

<pallas_src>
import jax
import jax.numpy as jnp
from jax.experimental import pallas as pl
from jax.experimental.pallas import tpu as pltpu

HIDDEN = 256


def _round_up(x: int, m: int) -> int:
    return ((x + m - 1) // m) * m


def value_fn_kernel(x_ref, w1_ref, b1_ref, w2_ref, b2_ref, o_ref):
    """One (TB, D) tile of states -> one (TB, 1) tile of state values."""
    x = x_ref[...]                                            # (TB, D) f32/bf16
    # Layer 1 on the MXU; accumulate in f32 regardless of the streaming dtype.
    h = jnp.dot(x, w1_ref[...], preferred_element_type=jnp.float32)
    h = jnp.maximum(h + b1_ref[...], 0.0)                     # bias + ReLU (f32)
    # Layer 2 (N=1): VPU multiply + XLU lane-reduce instead of an MXU matmul
    # that would use a single output lane while paying the full push/drain.
    v = jnp.sum(h * w2_ref[...], axis=1, keepdims=True)       # (TB, 1) f32
    o_ref[...] = v + b2_ref[0]                                # scalar bias (SMEM)


def value_function_forward(x, w1, b1, w2, b2, *, block_b=1024, stream_dtype=None):
    """Forward pass.

    x : (B, D) states.
    w1: (D, 256)  == PyTorch firstLayer.weight.T
    b1: (1, 256)  == PyTorch firstLayer.bias[None, :]
    w2: (1, 256)  == PyTorch FinalLayer.weight
    b2: (1,)      == PyTorch FinalLayer.bias
    Returns (B, 1) f32 state values.
    """
    B, D = x.shape
    assert w1.shape == (D, HIDDEN) and b1.shape == (1, HIDDEN)
    assert w2.shape == (1, HIDDEN) and b2.shape == (1,)

    # Batch tile: large enough to amortize the ~0.35 us/step overhead and hit
    # the HBM roofline, small enough that double-buffered tiles stay in the
    # few-MiB range on every generation. Small batches collapse to one tile.
    TB = min(block_b, _round_up(B, 256))
    B_pad = _round_up(B, TB)
    if B_pad != B:
        x = jnp.pad(x, ((0, B_pad - B), (0, 0)))

    if stream_dtype is not None:
        # Large-B inference is HBM-bound on streaming states: stream x (and
        # keep w1) narrow; f32 accumulation via preferred_element_type.
        x = x.astype(stream_dtype)
        w1 = w1.astype(stream_dtype)

    grid = (B_pad // TB,)
    itemsize = jnp.dtype(x.dtype).itemsize
    cost = pl.CostEstimate(
        flops=2 * B_pad * D * HIDDEN + 3 * B_pad * HIDDEN,
        transcendentals=0,
        bytes_accessed=(B_pad * D * itemsize + D * HIDDEN * itemsize
                        + 2 * HIDDEN * 4 + 4 + B_pad * 4),
    )

    out = pl.pallas_call(
        value_fn_kernel,
        out_shape=jax.ShapeDtypeStruct((B_pad, 1), jnp.float32),
        grid=grid,
        in_specs=[
            pl.BlockSpec((TB, D), lambda i: (i, 0)),             # x: streamed tiles
            pl.BlockSpec((D, HIDDEN), lambda i: (0, 0)),         # w1: VMEM resident
            pl.BlockSpec((1, HIDDEN), lambda i: (0, 0)),         # b1: VMEM resident
            pl.BlockSpec((1, HIDDEN), lambda i: (0, 0)),         # w2 row: resident
            pl.BlockSpec(memory_space=pltpu.MemorySpace.SMEM),   # b2 scalar
        ],
        out_specs=pl.BlockSpec((TB, 1), lambda i: (i, 0)),
        compiler_params=pltpu.CompilerParams(
            dimension_semantics=("parallel",),                   # v7x: 2 TCs
        ),
        cost_estimate=cost,
    )(x, w1, b1, w2, b2)
    return out[:B]


def init_params(key, observation_space):
    """Mirror nn.Linear's U(-1/sqrt(fan_in), 1/sqrt(fan_in)) init."""
    k1, k2, k3, k4 = jax.random.split(key, 4)
    lim1 = 1.0 / float(observation_space) ** 0.5
    lim2 = 1.0 / float(HIDDEN) ** 0.5
    w1 = jax.random.uniform(k1, (observation_space, HIDDEN), jnp.float32, -lim1, lim1)
    b1 = jax.random.uniform(k2, (1, HIDDEN), jnp.float32, -lim1, lim1)
    w2 = jax.random.uniform(k3, (1, HIDDEN), jnp.float32, -lim2, lim2)
    b2 = jax.random.uniform(k4, (1,), jnp.float32, -lim2, lim2)
    return w1, b1, w2, b2


def reference_forward(x, w1, b1, w2, b2):
    h = jnp.maximum(x @ w1 + b1, 0.0)
    return h @ w2.T + b2[None, :]


if __name__ == "__main__":
    key = jax.random.PRNGKey(0)
    obs_space = 8     # observation_space (small env state dim)

    kx, kp, kx2 = jax.random.split(key, 3)
    w1, b1, w2, b2 = init_params(kp, obs_space)

    # 1) Small batch, f32 path (matches the original PyTorch-style usage).
    x_small = jax.random.normal(kx, (4, obs_space), dtype=jnp.float32)
    out_small = jax.block_until_ready(value_function_forward(x_small, w1, b1, w2, b2))
    ref_small = reference_forward(x_small, w1, b1, w2, b2)
    assert out_small.shape == (4, 1), out_small.shape
    assert jnp.allclose(out_small, ref_small, atol=1e-4, rtol=1e-4)

    # 2) Larger batch that is not a tile multiple: exercises padding + the
    #    multi-tile pipelined grid (grid = 3 tiles of 256).
    x_big = jax.random.normal(kx2, (600, obs_space), dtype=jnp.float32)
    out_big = jax.block_until_ready(
        value_function_forward(x_big, w1, b1, w2, b2, block_b=256))
    ref_big = reference_forward(x_big, w1, b1, w2, b2)
    assert out_big.shape == (600, 1), out_big.shape
    assert jnp.allclose(out_big, ref_big, atol=1e-4, rtol=1e-4)

    # 3) bf16-streamed states/weights with f32 accumulation (looser tolerance
    #    vs the f32 reference, per the review's correctness note).
    out_bf16 = jax.block_until_ready(
        value_function_forward(x_big, w1, b1, w2, b2, block_b=256,
                               stream_dtype=jnp.bfloat16))
    assert out_bf16.shape == (600, 1), out_bf16.shape
    assert jnp.allclose(out_bf16, ref_big, atol=5e-2, rtol=5e-2)

    print("KERNEL_OK")
</pallas_src>

<mosaic_0001>
module attributes {stable_mosaic.version = 11 : i64} {
  func.func @value_fn_kernel(%arg0: i32, %arg1: memref<256x8xf32, #tpu.memory_space<vmem>>, %arg2: memref<8x256xf32, #tpu.memory_space<vmem>>, %arg3: memref<1x256xf32, #tpu.memory_space<vmem>>, %arg4: memref<1x256xf32, #tpu.memory_space<vmem>>, %arg5: memref<1xf32, #tpu.memory_space<smem>>, %arg6: memref<256x1xf32, #tpu.memory_space<vmem>>) attributes {dimension_semantics = [#tpu.dimension_semantics<parallel>], iteration_bounds = array<i64: 1>, scalar_prefetch = 0 : i64, scratch_operands = 0 : i64, tpu.core_type = #tpu.core_type<tc>, window_params = [{transform_indices = @transform_0, window_bounds = array<i64: 256, 8>}, {pipeline_mode = #tpu.pipeline_mode<synchronous>, transform_indices = @transform_1, window_bounds = array<i64: 8, 256>}, {pipeline_mode = #tpu.pipeline_mode<synchronous>, transform_indices = @transform_2, window_bounds = array<i64: 1, 256>}, {pipeline_mode = #tpu.pipeline_mode<synchronous>, transform_indices = @transform_3, window_bounds = array<i64: 1, 256>}, {transform_indices = @transform_4, window_bounds = array<i64: 1>}, {transform_indices = @transform_5, window_bounds = array<i64: 256, 1>}]} {
    %c0 = arith.constant 0 : index
    %c0_0 = arith.constant 0 : index
    %0 = vector.load %arg1[%c0, %c0_0] : memref<256x8xf32, #tpu.memory_space<vmem>>, vector<256x8xf32>
    %c0_1 = arith.constant 0 : index
    %c0_2 = arith.constant 0 : index
    %1 = vector.load %arg2[%c0_1, %c0_2] : memref<8x256xf32, #tpu.memory_space<vmem>>, vector<8x256xf32>
    %cst = arith.constant dense<0.000000e+00> : vector<256x256xf32>
    %2 = tpu.matmul %0, %1, %cst {dimension_numbers = #tpu.dot_dimension_numbers<[1], [0], [0], [1], [0, 0, 1, 1], [], []>} : vector<256x8xf32>, vector<8x256xf32>, vector<256x256xf32> -> vector<256x256xf32>
    %c0_3 = arith.constant 0 : index
    %c0_4 = arith.constant 0 : index
    %3 = vector.load %arg3[%c0_3, %c0_4] : memref<1x256xf32, #tpu.memory_space<vmem>>, vector<1x256xf32>
    %4 = vector.broadcast %3 : vector<1x256xf32> to vector<256x256xf32>
    %5 = arith.addf %2, %4 : vector<256x256xf32>
    %cst_5 = arith.constant 0.000000e+00 : f32
    %6 = vector.broadcast %cst_5 : f32 to vector<256x256xf32>
    %7 = arith.maximumf %5, %6 : vector<256x256xf32>
    %c0_6 = arith.constant 0 : index
    %c0_7 = arith.constant 0 : index
    %8 = vector.load %arg4[%c0_6, %c0_7] : memref<1x256xf32, #tpu.memory_space<vmem>>, vector<1x256xf32>
    %9 = vector.broadcast %8 : vector<1x256xf32> to vector<256x256xf32>
    %10 = arith.mulf %7, %9 : vector<256x256xf32>
    %cst_8 = arith.constant dense<0.000000e+00> : vector<256xf32>
    %11 = vector.multi_reduction <add>, %10, %cst_8 [1] : vector<256x256xf32> to vector<256xf32>
    %12 = vector.shape_cast %11 : vector<256xf32> to vector<256x1xf32>
    %c0_9 = arith.constant 0 : index
    %13 = memref.load %arg5[%c0_9] : memref<1xf32, #tpu.memory_space<smem>>
    %14 = vector.broadcast %13 : f32 to vector<256x1xf32>
    %15 = arith.addf %12, %14 : vector<256x1xf32>
    %c0_10 = arith.constant 0 : index
    %c0_11 = arith.constant 0 : index
    %16 = vector.load %arg6[%c0_10, %c0_11] : memref<256x1xf32, #tpu.memory_space<vmem>>, vector<256x1xf32>
    tpu.vector_store %arg6[%c0_10, %c0_11], %15 {strides = array<i32>} : memref<256x1xf32, #tpu.memory_space<vmem>>, vector<256x1xf32>,
    return
  }
  func.func @transform_0(%arg0: i32) -> (i32, i32) {
    %c0_i32 = arith.constant 0 : i32
    %c0_i32_0 = arith.constant 0 : i32
    return %arg0, %c0_i32 : i32, i32
  }
  func.func @transform_1(%arg0: i32) -> (i32, i32) {
    %c0_i32 = arith.constant 0 : i32
    %c0_i32_0 = arith.constant 0 : i32
    %c0_i32_1 = arith.constant 0 : i32
    return %c0_i32, %c0_i32_0 : i32, i32
  }
  func.func @transform_2(%arg0: i32) -> (i32, i32) {
    %c0_i32 = arith.constant 0 : i32
    %c0_i32_0 = arith.constant 0 : i32
    %c0_i32_1 = arith.constant 0 : i32
    return %c0_i32, %c0_i32_0 : i32, i32
  }
  func.func @transform_3(%arg0: i32) -> (i32, i32) {
    %c0_i32 = arith.constant 0 : i32
    %c0_i32_0 = arith.constant 0 : i32
    %c0_i32_1 = arith.constant 0 : i32
    return %c0_i32, %c0_i32_0 : i32, i32
  }
  func.func @transform_4(%arg0: i32) -> i32 {
    %c0_i32 = arith.constant 0 : i32
    %c0_i32_0 = arith.constant 0 : i32
    return %c0_i32 : i32
  }
  func.func @transform_5(%arg0: i32) -> (i32, i32) {
    %c0_i32 = arith.constant 0 : i32
    %c0_i32_0 = arith.constant 0 : i32
    return %arg0, %c0_i32 : i32, i32
  }
}

</mosaic_0001>

<llo_original>
// kernel: tpu_custom_call.1
$region0: #{tpu_custom_call.1}
  #allocation0 [shape = 'u32[]', space=smem, size = 0x4, offset = 0x4, fixed_abs, tag = 'smem constant byte address 0x4 - core index']
  #allocation1 [shape = 'u32[144,128]{1,0:T(1,128)}', space=vmem, size = 0x12000, scoped, tag = 'internal scratch']
  #allocation2 [shape = 'f32[1]{0:T(128)S(6)}', space=smem, size = 0x200, scoped, tag = 'scoped memory for tpu_custom_call.1']
  %s0 = inlined_call_operand.vmem [shape: f32[256,8], index: 0, kind: input, shape index: {}]
  %s1 = inlined_call_operand.vmem [shape: f32[8,256], index: 1, kind: input, shape index: {}]
  %s2 = inlined_call_operand.vmem [shape: f32[1,256], index: 2, kind: input, shape index: {}]
  %s3 = inlined_call_operand.vmem [shape: f32[1,256], index: 3, kind: input, shape index: {}]
  %s4 = inlined_call_operand.<no memory space> [shape: f32[1], index: 4, kind: input, shape index: {}]
  %s5 = inlined_call_operand.vmem [shape: f32[256,1], index: 5, kind: output, shape index: {}]
  %s6 = sld [smem:[#allocation0]]
  $region30: #{tpu_custom_call.1} parent=0
    _
  %s8 = ssub.s32 1, %s6
  %s9 = scalar_select 0, %s8, %s6
  %10 = sst [smem:[#allocation2]] %s4
  // Predicated region
  $region2: #{tpu_custom_call.1} parent=0 // pred_check
    _
  $region3: #{tpu_custom_call.1} parent=0 // pred_check_branch
    %12 = sbr.rel (0) target = $region5
  $region4: #{tpu_custom_call.1} parent=0 // pred_region
    _
  $region5: #{tpu_custom_call.1} parent=0 // pred_fallthru
    _
  // Predicated region
  $region6: #{tpu_custom_call.1} parent=0 // pred_check
    _
  $region7: #{tpu_custom_call.1} parent=0 // pred_check_branch
    %14 = sbr.rel (0) target = $region9
  $region8: #{tpu_custom_call.1} parent=0 // pred_region
    _
  $region9: #{tpu_custom_call.1} parent=0 // pred_fallthru
    _
  // Predicated region
  $region10: #{tpu_custom_call.1} parent=0 // pred_check
    _
  $region11: #{tpu_custom_call.1} parent=0 // pred_check_branch
    %16 = sbr.rel (0) target = $region13
  $region12: #{tpu_custom_call.1} parent=0 // pred_region
    _
  $region13: #{tpu_custom_call.1} parent=0 // pred_fallthru
    _
  // Predicated region
  $region14: #{tpu_custom_call.1} parent=0 // pred_check
    _
  $region15: #{tpu_custom_call.1} parent=0 // pred_check_branch
    %18 = sbr.rel (0) target = $region17
  $region16: #{tpu_custom_call.1} parent=0 // pred_region
    _
  $region17: #{tpu_custom_call.1} parent=0 // pred_fallthru
    _
  // Predicated region
  $region18: #{tpu_custom_call.1} parent=0 // pred_check
    _
  $region19: #{tpu_custom_call.1} parent=0 // pred_check_branch
    %20 = sbr.rel (0) target = $region21
  $region20: #{tpu_custom_call.1} parent=0 // pred_region
    _
  $region21: #{tpu_custom_call.1} parent=0 // pred_fallthru
    _
  %v21 = vld [vmem:[%s0] sm:$0xff]
  %v22 = vld [vmem:[%s0 + $0x8] sm:$0xff]
  %v23 = vld [vmem:[%s0 + $0x10] sm:$0xff]
  %v24 = vld [vmem:[%s0 + $0x18] sm:$0xff]
  %v25 = vld [vmem:[%s0 + $0x20] sm:$0xff]
  %v26 = vld [vmem:[%s0 + $0x28] sm:$0xff]
  %v27 = vld [vmem:[%s0 + $0x30] sm:$0xff]
  %v28 = vld [vmem:[%s0 + $0x38] sm:$0xff]
  %v29 = vld [vmem:[%s0 + $0x40] sm:$0xff]
  %v30 = vld [vmem:[%s0 + $0x48] sm:$0xff]
  %v31 = vld [vmem:[%s0 + $0x50] sm:$0xff]
  %v32 = vld [vmem:[%s0 + $0x58] sm:$0xff]
  %v33 = vld [vmem:[%s0 + $0x60] sm:$0xff]
  %v34 = vld [vmem:[%s0 + $0x68] sm:$0xff]
  %v35 = vld [vmem:[%s0 + $0x70] sm:$0xff]
  %v36 = vld [vmem:[%s0 + $0x78] sm:$0xff]
  %v37 = vld [vmem:[%s0 + $0x80] sm:$0xff]
  %v38 = vld [vmem:[%s0 + $0x88] sm:$0xff]
  %v39 = vld [vmem:[%s0 + $0x90] sm:$0xff]
  %v40 = vld [vmem:[%s0 + $0x98] sm:$0xff]
  %v41 = vld [vmem:[%s0 + $0xa0] sm:$0xff]
  %v42 = vld [vmem:[%s0 + $0xa8] sm:$0xff]
  %v43 = vld [vmem:[%s0 + $0xb0] sm:$0xff]
  %v44 = vld [vmem:[%s0 + $0xb8] sm:$0xff]
  %v45 = vld [vmem:[%s0 + $0xc0] sm:$0xff]
  %v46 = vld [vmem:[%s0 + $0xc8] sm:$0xff]
  %v47 = vld [vmem:[%s0 + $0xd0] sm:$0xff]
  %v48 = vld [vmem:[%s0 + $0xd8] sm:$0xff]
  %v49 = vld [vmem:[%s0 + $0xe0] sm:$0xff]
  %v50 = vld [vmem:[%s0 + $0xe8] sm:$0xff]
  %v51 = vld [vmem:[%s0 + $0xf0] sm:$0xff]
  %v52 = vld [vmem:[%s0 + $0xf8] sm:$0xff]
  %v53 = vld [vmem:[%s1] sm:$0xff]
  %v54 = vld [vmem:[%s1 + $0x8] sm:$0xff]
  %v55 = vld [vmem:[%s2] sm:$0x3]
  %v57 = vlaneseq
  %v58 = vshrl.u32 %v57, 7
  %v59 = vsub.s32 0, %v58
  %v60 = vrot.slane %v55, %v59
  %v61 = vlaneseq
  %v62 = vshrl.u32 %v61, 7
  %v63 = vsub.s32 1, %v62
  %v64 = vrot.slane %v55, %v63
  %vm67 = vcmask 64512
  %v69 = vsel %vm67, %v21, 0
  %v72 = vsel %vm67, %v22, 0
  %v75 = vsel %vm67, %v23, 0
  %v78 = vsel %vm67, %v24, 0
  %v81 = vsel %vm67, %v25, 0
  %v84 = vsel %vm67, %v26, 0
  %v87 = vsel %vm67, %v27, 0
  %v90 = vsel %vm67, %v28, 0
  %v93 = vsel %vm67, %v29, 0
  %v96 = vsel %vm67, %v30, 0
  %v99 = vsel %vm67, %v31, 0
  %v102 = vsel %vm67, %v32, 0
  %v105 = vsel %vm67, %v33, 0
  %v108 = vsel %vm67, %v34, 0
  %v111 = vsel %vm67, %v35, 0
  %v114 = vsel %vm67, %v36, 0
  %v117 = vsel %vm67, %v37, 0
  %v120 = vsel %vm67, %v38, 0
  %v123 = vsel %vm67, %v39, 0
  %v126 = vsel %vm67, %v40, 0
  %v129 = vsel %vm67, %v41, 0
  %v132 = vsel %vm67, %v42, 0
  %v135 = vsel %vm67, %v43, 0
  %v138 = vsel %vm67, %v44, 0
  %v141 = vsel %vm67, %v45, 0
  %v144 = vsel %vm67, %v46, 0
  %v147 = vsel %vm67, %v47, 0
  %v150 = vsel %vm67, %v48, 0
  %v153 = vsel %vm67, %v49, 0
  %v156 = vsel %vm67, %v50, 0
  %v159 = vsel %vm67, %v51, 0
  %v162 = vsel %vm67, %v52, 0
  %164 = vmatprep.subr.mxu0 0.0
  %165 = vmatpush1.msra.mxu0 0.0
  %166 = vmatprep.subr.mxu0 0.0
  %167 = vmatpush1.msra.mxu0 0.0
  %168 = vmatprep.subr.mxu0 0.0
  %169 = vmatpush1.msra.mxu0 0.0
  %170 = vmatprep.subr.mxu0 0.0
  %171 = vmatpush1.msra.mxu0 0.0
  %172 = vmatprep.subr.mxu0 0.0
  %173 = vmatpush1.msra.mxu0 0.0
  %174 = vmatprep.subr.mxu0 0.0
  %175 = vmatpush1.msra.mxu0 0.0
  %176 = vmatprep.subr.mxu0 0.0
  %177 = vmatpush1.msra.mxu0 0.0
  %178 = vmatprep.subr.mxu0 0.0
  %179 = vmatpush1.msra.mxu0 0.0
  %180 = vmatprep.subr.mxu0 0.0
  %181 = vmatpush1.msra.mxu0 0.0
  %182 = vmatprep.subr.mxu0 0.0
  %183 = vmatpush1.msra.mxu0 0.0
  %184 = vmatprep.subr.mxu0 0.0
  %185 = vmatpush1.msra.mxu0 0.0
  %186 = vmatprep.subr.mxu0 0.0
  %187 = vmatpush1.msra.mxu0 0.0
  %188 = vmatprep.subr.mxu0 0.0
  %189 = vmatpush1.msra.mxu0 0.0
  %190 = vmatprep.subr.mxu0 0.0
  %191 = vmatpush1.msra.mxu0 0.0
  %192 = vmatprep.subr.mxu0 0.0
  %193 = vmatpush1.msra.mxu0 0.0
  %194 = vmatprep.subr.mxu0 %v54
  %195 = vmatpush1.msra.mxu0 %v53
  %196 = vmatprep.subr.mxu0 0.0
  %197 = vmatpush2.msra.mxu0 0.0
  %198 = vmatprep.subr.mxu0 0.0
  %199 = vmatpush2.msra.mxu0 0.0
  %200 = vmatprep.subr.mxu0 0.0
  %201 = vmatpush2.msra.mxu0 0.0
  %202 = vmatprep.subr.mxu0 0.0
  %203 = vmatpush2.msra.mxu0 0.0
  %204 = vmatprep.subr.mxu0 0.0
  %205 = vmatpush2.msra.mxu0 0.0
  %206 = vmatprep.subr.mxu0 0.0
  %207 = vmatpush2.msra.mxu0 0.0
  %208 = vmatprep.subr.mxu0 0.0
  %209 = vmatpush2.msra.mxu0 0.0
  %210 = vmatprep.subr.mxu0 0.0
  %211 = vmatpush2.msra.mxu0 0.0
  %212 = vmatprep.subr.mxu0 0.0
  %213 = vmatpush2.msra.mxu0 0.0
  %214 = vmatprep.subr.mxu0 0.0
  %215 = vmatpush2.msra.mxu0 0.0
  %216 = vmatprep.subr.mxu0 0.0
  %217 = vmatpush2.msra.mxu0 0.0
  %218 = vmatprep.subr.mxu0 0.0
  %219 = vmatpush2.msra.mxu0 0.0
  %220 = vmatprep.subr.mxu0 0.0
  %221 = vmatpush2.msra.mxu0 0.0
  %222 = vmatprep.subr.mxu0 0.0
  %223 = vmatpush2.msra.mxu0 0.0
  %224 = vmatprep.subr.mxu0 0.0
  %225 = vmatpush2.msra.mxu0 0.0
  %226 = vmatprep.subr.mxu0 0.0
  %227 = vmatpush2.msra.mxu0 0.0
  %228 = vmatprep.mubr.f32.mxu0 0.0
  %229 = vmatmul.mubr.f32.gmra.mxu0 %v69
  %v230 = vpop.f32.mrf.mxu0
  %v231 = vadd.f32 %v60, %v230
  %v232 = vpop.f32.mrf.mxu0
  %v233 = vadd.f32 %v64, %v232
  %234 = vmatprep.mubr.f32.mxu0 0.0
  %235 = vmatmul.mubr.f32.gmra.mxu0 %v72
  %v236 = vpop.f32.mrf.mxu0
  %v237 = vadd.f32 %v60, %v236
  %v238 = vpop.f32.mrf.mxu0
  %v239 = vadd.f32 %v64, %v238
  %240 = vmatprep.mubr.f32.mxu0 0.0
  %241 = vmatmul.mubr.f32.gmra.mxu0 %v75
  %v242 = vpop.f32.mrf.mxu0
  %v243 = vadd.f32 %v60, %v242
  %v244 = vpop.f32.mrf.mxu0
  %v245 = vadd.f32 %v64, %v244
  %246 = vmatprep.mubr.f32.mxu0 0.0
  %247 = vmatmul.mubr.f32.gmra.mxu0 %v78
  %v248 = vpop.f32.mrf.mxu0
  %v249 = vadd.f32 %v60, %v248
  %v250 = vpop.f32.mrf.mxu0
  %v251 = vadd.f32 %v64, %v250
  %252 = vmatprep.mubr.f32.mxu0 0.0
  %253 = vmatmul.mubr.f32.gmra.mxu0 %v81
  %v254 = vpop.f32.mrf.mxu0
  %v255 = vadd.f32 %v60, %v254
  %v256 = vpop.f32.mrf.mxu0
  %v257 = vadd.f32 %v64, %v256
  %258 = vmatprep.mubr.f32.mxu0 0.0
  %259 = vmatmul.mubr.f32.gmra.mxu0 %v84
  %v260 = vpop.f32.mrf.mxu0
  %v261 = vadd.f32 %v60, %v260
  %v262 = vpop.f32.mrf.mxu0
  %v263 = vadd.f32 %v64, %v262
  %264 = vmatprep.mubr.f32.mxu0 0.0
  %265 = vmatmul.mubr.f32.gmra.mxu0 %v87
  %v266 = vpop.f32.mrf.mxu0
  %v267 = vadd.f32 %v60, %v266
  %v268 = vpop.f32.mrf.mxu0
  %v269 = vadd.f32 %v64, %v268
  %270 = vmatprep.mubr.f32.mxu0 0.0
  %271 = vmatmul.mubr.f32.gmra.mxu0 %v90
  %v272 = vpop.f32.mrf.mxu0
  %v273 = vadd.f32 %v60, %v272
  %v274 = vpop.f32.mrf.mxu0
  %v275 = vadd.f32 %v64, %v274
  %276 = vmatprep.mubr.f32.mxu0 0.0
  %277 = vmatmul.mubr.f32.gmra.mxu0 %v93
  %v278 = vpop.f32.mrf.mxu0
  %v279 = vadd.f32 %v60, %v278
  %v280 = vpop.f32.mrf.mxu0
  %v281 = vadd.f32 %v64, %v280
  %282 = vmatprep.mubr.f32.mxu0 0.0
  %283 = vmatmul.mubr.f32.gmra.mxu0 %v96
  %v284 = vpop.f32.mrf.mxu0
  %v285 = vadd.f32 %v60, %v284
  %v286 = vpop.f32.mrf.mxu0
  %v287 = vadd.f32 %v64, %v286
  %288 = vmatprep.mubr.f32.mxu0 0.0
  %289 = vmatmul.mubr.f32.gmra.mxu0 %v99
  %v290 = vpop.f32.mrf.mxu0
  %v291 = vadd.f32 %v60, %v290
  %v292 = vpop.f32.mrf.mxu0
  %v293 = vadd.f32 %v64, %v292
  %294 = vmatprep.mubr.f32.mxu0 0.0
  %295 = vmatmul.mubr.f32.gmra.mxu0 %v102
  %v296 = vpop.f32.mrf.mxu0
  %v297 = vadd.f32 %v60, %v296
  %v298 = vpop.f32.mrf.mxu0
  %v299 = vadd.f32 %v64, %v298
  %300 = vmatprep.mubr.f32.mxu0 0.0
  %301 = vmatmul.mubr.f32.gmra.mxu0 %v105
  %v302 = vpop.f32.mrf.mxu0
  %v303 = vadd.f32 %v60, %v302
  %v304 = vpop.f32.mrf.mxu0
  %v305 = vadd.f32 %v64, %v304
  %306 = vmatprep.mubr.f32.mxu0 0.0
  %307 = vmatmul.mubr.f32.gmra.mxu0 %v108
  %v308 = vpop.f32.mrf.mxu0
  %v309 = vadd.f32 %v60, %v308
  %v310 = vpop.f32.mrf.mxu0
  %v311 = vadd.f32 %v64, %v310
  %312 = vmatprep.mubr.f32.mxu0 0.0
  %313 = vmatmul.mubr.f32.gmra.mxu0 %v111
  %v314 = vpop.f32.mrf.mxu0
  %v315 = vadd.f32 %v60, %v314
  %v316 = vpop.f32.mrf.mxu0
  %v317 = vadd.f32 %v64, %v316
  %318 = vmatprep.mubr.f32.mxu0 0.0
  %319 = vmatmul.mubr.f32.gmra.mxu0 %v114
  %v320 = vpop.f32.mrf.mxu0
  %v321 = vadd.f32 %v60, %v320
  %v322 = vpop.f32.mrf.mxu0
  %v323 = vadd.f32 %v64, %v322
  %324 = vmatprep.mubr.f32.mxu0 0.0
  %325 = vmatmul.mubr.f32.gmra.mxu0 %v117
  %v326 = vpop.f32.mrf.mxu0
  %v327 = vadd.f32 %v60, %v326
  %v328 = vpop.f32.mrf.mxu0
  %v329 = vadd.f32 %v64, %v328
  %330 = vmatprep.mubr.f32.mxu0 0.0
  %331 = vmatmul.mubr.f32.gmra.mxu0 %v120
  %v332 = vpop.f32.mrf.mxu0
  %v333 = vadd.f32 %v60, %v332
  %v334 = vpop.f32.mrf.mxu0
  %v335 = vadd.f32 %v64, %v334
  %336 = vmatprep.mubr.f32.mxu0 0.0
  %337 = vmatmul.mubr.f32.gmra.mxu0 %v123
  %v338 = vpop.f32.mrf.mxu0
  %v339 = vadd.f32 %v60, %v338
  %v340 = vpop.f32.mrf.mxu0
  %v341 = vadd.f32 %v64, %v340
  %342 = vmatprep.mubr.f32.mxu0 0.0
  %343 = vmatmul.mubr.f32.gmra.mxu0 %v126
  %v344 = vpop.f32.mrf.mxu0
  %v345 = vadd.f32 %v60, %v344
  %v346 = vpop.f32.mrf.mxu0
  %v347 = vadd.f32 %v64, %v346
  %348 = vmatprep.mubr.f32.mxu0 0.0
  %349 = vmatmul.mubr.f32.gmra.mxu0 %v129
  %v350 = vpop.f32.mrf.mxu0
  %v351 = vadd.f32 %v60, %v350
  %v352 = vpop.f32.mrf.mxu0
  %v353 = vadd.f32 %v64, %v352
  %354 = vmatprep.mubr.f32.mxu0 0.0
  %355 = vmatmul.mubr.f32.gmra.mxu0 %v132
  %v356 = vpop.f32.mrf.mxu0
  %v357 = vadd.f32 %v60, %v356
  %v358 = vpop.f32.mrf.mxu0
  %v359 = vadd.f32 %v64, %v358
  %360 = vmatprep.mubr.f32.mxu0 0.0
  %361 = vmatmul.mubr.f32.gmra.mxu0 %v135
  %v362 = vpop.f32.mrf.mxu0
  %v363 = vadd.f32 %v60, %v362
  %v364 = vpop.f32.mrf.mxu0
  %v365 = vadd.f32 %v64, %v364
  %366 = vmatprep.mubr.f32.mxu0 0.0
  %367 = vmatmul.mubr.f32.gmra.mxu0 %v138
  %v368 = vpop.f32.mrf.mxu0
  %v369 = vadd.f32 %v60, %v368
  %v370 = vpop.f32.mrf.mxu0
  %v371 = vadd.f32 %v64, %v370
  %372 = vmatprep.mubr.f32.mxu0 0.0
  %373 = vmatmul.mubr.f32.gmra.mxu0 %v141
  %v374 = vpop.f32.mrf.mxu0
  %v375 = vadd.f32 %v60, %v374
  %v376 = vpop.f32.mrf.mxu0
  %v377 = vadd.f32 %v64, %v376
  %378 = vmatprep.mubr.f32.mxu0 0.0
  %379 = vmatmul.mubr.f32.gmra.mxu0 %v144
  %v380 = vpop.f32.mrf.mxu0
  %v381 = vadd.f32 %v60, %v380
  %v382 = vpop.f32.mrf.mxu0
  %v383 = vadd.f32 %v64, %v382
  %384 = vmatprep.mubr.f32.mxu0 0.0
  %385 = vmatmul.mubr.f32.gmra.mxu0 %v147
  %v386 = vpop.f32.mrf.mxu0
  %v387 = vadd.f32 %v60, %v386
  %v388 = vpop.f32.mrf.mxu0
  %v389 = vadd.f32 %v64, %v388
  %390 = vmatprep.mubr.f32.mxu0 0.0
  %391 = vmatmul.mubr.f32.gmra.mxu0 %v150
  %v392 = vpop.f32.mrf.mxu0
  %v393 = vadd.f32 %v60, %v392
  %v394 = vpop.f32.mrf.mxu0
  %v395 = vadd.f32 %v64, %v394
  %396 = vmatprep.mubr.f32.mxu0 0.0
  %397 = vmatmul.mubr.f32.gmra.mxu0 %v153
  %v398 = vpop.f32.mrf.mxu0
  %v399 = vadd.f32 %v60, %v398
  %v400 = vpop.f32.mrf.mxu0
  %v401 = vadd.f32 %v64, %v400
  %402 = vmatprep.mubr.f32.mxu0 0.0
  %403 = vmatmul.mubr.f32.gmra.mxu0 %v156
  %v404 = vpop.f32.mrf.mxu0
  %v405 = vadd.f32 %v60, %v404
  %v406 = vpop.f32.mrf.mxu0
  %v407 = vadd.f32 %v64, %v406
  %408 = vmatprep.mubr.f32.mxu0 0.0
  %409 = vmatmul.mubr.f32.gmra.mxu0 %v159
  %v410 = vpop.f32.mrf.mxu0
  %v411 = vadd.f32 %v60, %v410
  %v412 = vpop.f32.mrf.mxu0
  %v413 = vadd.f32 %v64, %v412
  %414 = vmatprep.mubr.f32.mxu0 0.0
  %415 = vmatmul.mubr.f32.gmra.mxu0 %v162
  %v416 = vpop.f32.mrf.mxu0
  %v417 = vadd.f32 %v60, %v416
  %v418 = vpop.f32.mrf.mxu0
  %v419 = vadd.f32 %v64, %v418
  %420 = vdwg.mxu0
  %v421 = vmax.f32 %v231, 0.0
  %v422 = vmax.f32 %v233, 0.0
  %v423 = vmax.f32 %v237, 0.0
  %v424 = vmax.f32 %v239, 0.0
  %v425 = vmax.f32 %v243, 0.0
  %v426 = vmax.f32 %v245, 0.0
  %v427 = vmax.f32 %v249, 0.0
  %v428 = vmax.f32 %v251, 0.0
  %v429 = vmax.f32 %v255, 0.0
  %v430 = vmax.f32 %v257, 0.0
  %v431 = vmax.f32 %v261, 0.0
  %v432 = vmax.f32 %v263, 0.0
  %v433 = vmax.f32 %v267, 0.0
  %v434 = vmax.f32 %v269, 0.0
  %v435 = vmax.f32 %v273, 0.0
  %v436 = vmax.f32 %v275, 0.0
  %v437 = vmax.f32 %v279, 0.0
  %v438 = vmax.f32 %v281, 0.0
  %v439 = vmax.f32 %v285, 0.0
  %v440 = vmax.f32 %v287, 0.0
  %v441 = vmax.f32 %v291, 0.0
  %v442 = vmax.f32 %v293, 0.0
  %v443 = vmax.f32 %v297, 0.0
  %v444 = vmax.f32 %v299, 0.0
  %v445 = vmax.f32 %v303, 0.0
  %v446 = vmax.f32 %v305, 0.0
  %v447 = vmax.f32 %v309, 0.0
  %v448 = vmax.f32 %v311, 0.0
  %v449 = vmax.f32 %v315, 0.0
  %v450 = vmax.f32 %v317, 0.0
  %v451 = vmax.f32 %v321, 0.0
  %v452 = vmax.f32 %v323, 0.0
  %v453 = vmax.f32 %v327, 0.0
  %v454 = vmax.f32 %v329, 0.0
  %v455 = vmax.f32 %v333, 0.0
  %v456 = vmax.f32 %v335, 0.0
  %v457 = vmax.f32 %v339, 0.0
  %v458 = vmax.f32 %v341, 0.0
  %v459 = vmax.f32 %v345, 0.0
  %v460 = vmax.f32 %v347, 0.0
  %v461 = vmax.f32 %v351, 0.0
  %v462 = vmax.f32 %v353, 0.0
  %v463 = vmax.f32 %v357, 0.0
  %v464 = vmax.f32 %v359, 0.0
  %v465 = vmax.f32 %v363, 0.0
  %v466 = vmax.f32 %v365, 0.0
  %v467 = vmax.f32 %v369, 0.0
  %v468 = vmax.f32 %v371, 0.0
  %v469 = vmax.f32 %v375, 0.0
  %v470 = vmax.f32 %v377, 0.0
  %v471 = vmax.f32 %v381, 0.0
  %v472 = vmax.f32 %v383, 0.0
  %v473 = vmax.f32 %v387, 0.0
  %v474 = vmax.f32 %v389, 0.0
  %v475 = vmax.f32 %v393, 0.0
  %v476 = vmax.f32 %v395, 0.0
  %v477 = vmax.f32 %v399, 0.0
  %v478 = vmax.f32 %v401, 0.0
  %v479 = vmax.f32 %v405, 0.0
  %v480 = vmax.f32 %v407, 0.0
  %v481 = vmax.f32 %v411, 0.0
  %v482 = vmax.f32 %v413, 0.0
  %v483 = vmax.f32 %v417, 0.0
  %v484 = vmax.f32 %v419, 0.0
  %v485 = vld [vmem:[%s3] sm:$0x3]
  %v487 = vlaneseq
  %v488 = vshrl.u32 %v487, 7
  %v489 = vsub.s32 0, %v488
  %v490 = vrot.slane %v485, %v489
  %v491 = vlaneseq
  %v492 = vshrl.u32 %v491, 7
  %v493 = vsub.s32 1, %v492
  %v494 = vrot.slane %v485, %v493
  %v497 = vmul.f32 %v421, %v490
  %v498 = vmul.f32 %v422, %v494
  %v499 = vmul.f32 %v423, %v490
  %v500 = vmul.f32 %v424, %v494
  %v501 = vmul.f32 %v425, %v490
  %v502 = vmul.f32 %v426, %v494
  %v503 = vmul.f32 %v427, %v490
  %v504 = vmul.f32 %v428, %v494
  %v505 = vmul.f32 %v429, %v490
  %v506 = vmul.f32 %v430, %v494
  %v507 = vmul.f32 %v431, %v490
  %v508 = vmul.f32 %v432, %v494
  %v509 = vmul.f32 %v433, %v490
  %v510 = vmul.f32 %v434, %v494
  %v511 = vmul.f32 %v435, %v490
  %v512 = vmul.f32 %v436, %v494
  %v513 = vmul.f32 %v437, %v490
  %v514 = vmul.f32 %v438, %v494
  %v515 = vmul.f32 %v439, %v490
  %v516 = vmul.f32 %v440, %v494
  %v517 = vmul.f32 %v441, %v490
  %v518 = vmul.f32 %v442, %v494
  %v519 = vmul.f32 %v443, %v490
  %v520 = vmul.f32 %v444, %v494
  %v521 = vmul.f32 %v445, %v490
  %v522 = vmul.f32 %v446, %v494
  %v523 = vmul.f32 %v447, %v490
  %v524 = vmul.f32 %v448, %v494
  %v525 = vmul.f32 %v449, %v490
  %v526 = vmul.f32 %v450, %v494
  %v527 = vmul.f32 %v451, %v490
  %v528 = vmul.f32 %v452, %v494
  %v529 = vmul.f32 %v453, %v490
  %v530 = vmul.f32 %v454, %v494
  %v531 = vmul.f32 %v455, %v490
  %v532 = vmul.f32 %v456, %v494
  %v533 = vmul.f32 %v457, %v490
  %v534 = vmul.f32 %v458, %v494
  %v535 = vmul.f32 %v459, %v490
  %v536 = vmul.f32 %v460, %v494
  %v537 = vmul.f32 %v461, %v490
  %v538 = vmul.f32 %v462, %v494
  %v539 = vmul.f32 %v463, %v490
  %v540 = vmul.f32 %v464, %v494
  %v541 = vmul.f32 %v465, %v490
  %v542 = vmul.f32 %v466, %v494
  %v543 = vmul.f32 %v467, %v490
  %v544 = vmul.f32 %v468, %v494
  %v545 = vmul.f32 %v469, %v490
  %v546 = vmul.f32 %v470, %v494
  %v547 = vmul.f32 %v471, %v490
  %v548 = vmul.f32 %v472, %v494
  %v549 = vmul.f32 %v473, %v490
  %v550 = vmul.f32 %v474, %v494
  %v551 = vmul.f32 %v475, %v490
  %v552 = vmul.f32 %v476, %v494
  %v553 = vmul.f32 %v477, %v490
  %v554 = vmul.f32 %v478, %v494
  %v555 = vmul.f32 %v479, %v490
  %v556 = vmul.f32 %v480, %v494
  %v557 = vmul.f32 %v481, %v490
  %v558 = vmul.f32 %v482, %v494
  %v559 = vmul.f32 %v483, %v490
  %v560 = vmul.f32 %v484, %v494
  %v561 = vadd.f32 %v497, %v498
  %562 = vadd.xlane.f32.xlu0 %v561
  %v563 = vpop.xlane.xlu0 %562
  %v564 = vadd.f32 %v499, %v500
  %565 = vadd.xlane.f32.xlu0 %v564
  %v566 = vpop.xlane.xlu0 %565
  %v567 = vadd.f32 %v501, %v502
  %568 = vadd.xlane.f32.xlu0 %v567
  %v569 = vpop.xlane.xlu0 %568
  %v570 = vadd.f32 %v503, %v504
  %571 = vadd.xlane.f32.xlu0 %v570
  %v572 = vpop.xlane.xlu0 %571
  %v573 = vadd.f32 %v505, %v506
  %574 = vadd.xlane.f32.xlu0 %v573
  %v575 = vpop.xlane.xlu0 %574
  %v576 = vadd.f32 %v507, %v508
  %577 = vadd.xlane.f32.xlu0 %v576
  %v578 = vpop.xlane.xlu0 %577
  %v579 = vadd.f32 %v509, %v510
  %580 = vadd.xlane.f32.xlu0 %v579
  %v581 = vpop.xlane.xlu0 %580
  %v582 = vadd.f32 %v511, %v512
  %583 = vadd.xlane.f32.xlu0 %v582
  %v584 = vpop.xlane.xlu0 %583
  %v585 = vadd.f32 %v513, %v514
  %586 = vadd.xlane.f32.xlu0 %v585
  %v587 = vpop.xlane.xlu0 %586
  %v588 = vadd.f32 %v515, %v516
  %589 = vadd.xlane.f32.xlu0 %v588
  %v590 = vpop.xlane.xlu0 %589
  %v591 = vadd.f32 %v517, %v518
  %592 = vadd.xlane.f32.xlu0 %v591
  %v593 = vpop.xlane.xlu0 %592
  %v594 = vadd.f32 %v519, %v520
  %595 = vadd.xlane.f32.xlu0 %v594
  %v596 = vpop.xlane.xlu0 %595
  %v597 = vadd.f32 %v521, %v522
  %598 = vadd.xlane.f32.xlu0 %v597
  %v599 = vpop.xlane.xlu0 %598
  %v600 = vadd.f32 %v523, %v524
  %601 = vadd.xlane.f32.xlu0 %v600
  %v602 = vpop.xlane.xlu0 %601
  %v603 = vadd.f32 %v525, %v526
  %604 = vadd.xlane.f32.xlu0 %v603
  %v605 = vpop.xlane.xlu0 %604
  %v606 = vadd.f32 %v527, %v528
  %607 = vadd.xlane.f32.xlu0 %v606
  %v608 = vpop.xlane.xlu0 %607
  %v609 = vadd.f32 %v529, %v530
  %610 = vadd.xlane.f32.xlu0 %v609
  %v611 = vpop.xlane.xlu0 %610
  %v612 = vadd.f32 %v531, %v532
  %613 = vadd.xlane.f32.xlu0 %v612
  %v614 = vpop.xlane.xlu0 %613
  %v615 = vadd.f32 %v533, %v534
  %616 = vadd.xlane.f32.xlu0 %v615
  %v617 = vpop.xlane.xlu0 %616
  %v618 = vadd.f32 %v535, %v536
  %619 = vadd.xlane.f32.xlu0 %v618
  %v620 = vpop.xlane.xlu0 %619
  %v621 = vadd.f32 %v537, %v538
  %622 = vadd.xlane.f32.xlu0 %v621
  %v623 = vpop.xlane.xlu0 %622
  %v624 = vadd.f32 %v539, %v540
  %625 = vadd.xlane.f32.xlu0 %v624
  %v626 = vpop.xlane.xlu0 %625
  %v627 = vadd.f32 %v541, %v542
  %628 = vadd.xlane.f32.xlu0 %v627
  %v629 = vpop.xlane.xlu0 %628
  %v630 = vadd.f32 %v543, %v544
  %631 = vadd.xlane.f32.xlu0 %v630
  %v632 = vpop.xlane.xlu0 %631
  %v633 = vadd.f32 %v545, %v546
  %634 = vadd.xlane.f32.xlu0 %v633
  %v635 = vpop.xlane.xlu0 %634
  %v636 = vadd.f32 %v547, %v548
  %637 = vadd.xlane.f32.xlu0 %v636
  %v638 = vpop.xlane.xlu0 %637
  %v639 = vadd.f32 %v549, %v550
  %640 = vadd.xlane.f32.xlu0 %v639
  %v641 = vpop.xlane.xlu0 %640
  %v642 = vadd.f32 %v551, %v552
  %643 = vadd.xlane.f32.xlu0 %v642
  %v644 = vpop.xlane.xlu0 %643
  %v645 = vadd.f32 %v553, %v554
  %646 = vadd.xlane.f32.xlu0 %v645
  %v647 = vpop.xlane.xlu0 %646
  %v648 = vadd.f32 %v555, %v556
  %649 = vadd.xlane.f32.xlu0 %v648
  %v650 = vpop.xlane.xlu0 %649
  %v651 = vadd.f32 %v557, %v558
  %652 = vadd.xlane.f32.xlu0 %v651
  %v653 = vpop.xlane.xlu0 %652
  %v654 = vadd.f32 %v559, %v560
  %655 = vadd.xlane.f32.xlu0 %v654
  %v656 = vpop.xlane.xlu0 %655
  %s657 = sld [smem:[#allocation2]]
  %v658 = vstv %s657
  %v659 = vadd.f32 %v563, %v658
  %v660 = vadd.f32 %v566, %v658
  %v661 = vadd.f32 %v569, %v658
  %v662 = vadd.f32 %v572, %v658
  %v663 = vadd.f32 %v575, %v658
  %v664 = vadd.f32 %v578, %v658
  %v665 = vadd.f32 %v581, %v658
  %v666 = vadd.f32 %v584, %v658
  %v667 = vadd.f32 %v587, %v658
  %v668 = vadd.f32 %v590, %v658
  %v669 = vadd.f32 %v593, %v658
  %v670 = vadd.f32 %v596, %v658
  %v671 = vadd.f32 %v599, %v658
  %v672 = vadd.f32 %v602, %v658
  %v673 = vadd.f32 %v605, %v658
  %v674 = vadd.f32 %v608, %v658
  %v675 = vadd.f32 %v611, %v658
  %v676 = vadd.f32 %v614, %v658
  %v677 = vadd.f32 %v617, %v658
  %v678 = vadd.f32 %v620, %v658
  %v679 = vadd.f32 %v623, %v658
  %v680 = vadd.f32 %v626, %v658
  %v681 = vadd.f32 %v629, %v658
  %v682 = vadd.f32 %v632, %v658
  %v683 = vadd.f32 %v635, %v658
  %v684 = vadd.f32 %v638, %v658
  %v685 = vadd.f32 %v641, %v658
  %v686 = vadd.f32 %v644, %v658
  %v687 = vadd.f32 %v647, %v658
  %v688 = vadd.f32 %v650, %v658
  %v689 = vadd.f32 %v653, %v658
  %v690 = vadd.f32 %v656, %v658
  %vm691 = vcmask 7168
  %692 = vst.msk [vmem:[%s5] sm:$0xff] %vm691, %v659
  %693 = vst.msk [vmem:[%s5 + $0x8] sm:$0xff] %vm691, %v660
  %694 = vst.msk [vmem:[%s5 + $0x10] sm:$0xff] %vm691, %v661
  %695 = vst.msk [vmem:[%s5 + $0x18] sm:$0xff] %vm691, %v662
  %696 = vst.msk [vmem:[%s5 + $0x20] sm:$0xff] %vm691, %v663
  %697 = vst.msk [vmem:[%s5 + $0x28] sm:$0xff] %vm691, %v664
  %698 = vst.msk [vmem:[%s5 + $0x30] sm:$0xff] %vm691, %v665
  %699 = vst.msk [vmem:[%s5 + $0x38] sm:$0xff] %vm691, %v666
  %700 = vst.msk [vmem:[%s5 + $0x40] sm:$0xff] %vm691, %v667
  %701 = vst.msk [vmem:[%s5 + $0x48] sm:$0xff] %vm691, %v668
  %702 = vst.msk [vmem:[%s5 + $0x50] sm:$0xff] %vm691, %v669
  %703 = vst.msk [vmem:[%s5 + $0x58] sm:$0xff] %vm691, %v670
  %704 = vst.msk [vmem:[%s5 + $0x60] sm:$0xff] %vm691, %v671
  %705 = vst.msk [vmem:[%s5 + $0x68] sm:$0xff] %vm691, %v672
  %706 = vst.msk [vmem:[%s5 + $0x70] sm:$0xff] %vm691, %v673
  %707 = vst.msk [vmem:[%s5 + $0x78] sm:$0xff] %vm691, %v674
  %708 = vst.msk [vmem:[%s5 + $0x80] sm:$0xff] %vm691, %v675
  %709 = vst.msk [vmem:[%s5 + $0x88] sm:$0xff] %vm691, %v676
  %710 = vst.msk [vmem:[%s5 + $0x90] sm:$0xff] %vm691, %v677
  %711 = vst.msk [vmem:[%s5 + $0x98] sm:$0xff] %vm691, %v678
  %712 = vst.msk [vmem:[%s5 + $0xa0] sm:$0xff] %vm691, %v679
  %713 = vst.msk [vmem:[%s5 + $0xa8] sm:$0xff] %vm691, %v680
  %714 = vst.msk [vmem:[%s5 + $0xb0] sm:$0xff] %vm691, %v681
  %715 = vst.msk [vmem:[%s5 + $0xb8] sm:$0xff] %vm691, %v682
  %716 = vst.msk [vmem:[%s5 + $0xc0] sm:$0xff] %vm691, %v683
  %717 = vst.msk [vmem:[%s5 + $0xc8] sm:$0xff] %vm691, %v684
  %718 = vst.msk [vmem:[%s5 + $0xd0] sm:$0xff] %vm691, %v685
  %719 = vst.msk [vmem:[%s5 + $0xd8] sm:$0xff] %vm691, %v686
  %720 = vst.msk [vmem:[%s5 + $0xe0] sm:$0xff] %vm691, %v687
  %721 = vst.msk [vmem:[%s5 + $0xe8] sm:$0xff] %vm691, %v688
  %722 = vst.msk [vmem:[%s5 + $0xf0] sm:$0xff] %vm691, %v689
  %723 = vst.msk [vmem:[%s5 + $0xf8] sm:$0xff] %vm691, %v690
  // Predicated region
  $region22: #{tpu_custom_call.1} parent=0 // pred_check
    _
  $region23: #{tpu_custom_call.1} parent=0 // pred_check_branch
    %725 = sbr.rel (0) target = $region25
  $region24: #{tpu_custom_call.1} parent=0 // pred_region
    _
  $region25: #{tpu_custom_call.1} parent=0 // pred_fallthru
    _
  // Predicated region
  $region26: #{tpu_custom_call.1} parent=0 // pred_check
    _
  $region27: #{tpu_custom_call.1} parent=0 // pred_check_branch
    %727 = sbr.rel (0) target = $region29
  $region28: #{tpu_custom_call.1} parent=0 // pred_region
    _
  $region29: #{tpu_custom_call.1} parent=0 // pred_fallthru
    _

</llo_original>
